<compile_context>
chip_gen: v7x
topology: tpu7x:2x2x1
jax: 0.10.0
libtpu: 0.0.40
codegen_flags: <defaults>
</compile_context>

<pallas_src>
import functools
import math

import jax
import jax.numpy as jnp
from jax.experimental import pallas as pl
from jax.experimental.pallas import tpu as pltpu

_LANE = 128
_VMEM = pl.BlockSpec(memory_space=pltpu.MemorySpace.VMEM)


def _round_up(n, m):
    return (n + m - 1) // m * m


# ----------------------------------------------------------------------------
# Fused decoder-step kernel
# ----------------------------------------------------------------------------

def _decoder_step_kernel(n_layers, *refs):
    """Fully fused decoder step.

    refs layout:
      x_ref                        (B, D)
      h_ref, c_ref                 (L, B, H) stacked per-layer state
      per layer i (4 refs each):   W_i   (in_i + H, 4H [+ H proj for layer 0])
                                   b_i   (1, 4H [+ H])
                                   ln_g  (1, H), ln_b (1, H)
      fc_w (H, P), fc_b (1, P)     P = output_dim padded up to a lane multiple
      outputs: pred (B, P), h_out (L, B, H), c_out (L, B, H)
    """
    x_ref, h_ref, c_ref = refs[0], refs[1], refs[2]
    layer_refs = refs[3:3 + 4 * n_layers]
    fc_w_ref, fc_b_ref = refs[3 + 4 * n_layers:3 + 4 * n_layers + 2]
    pred_ref, hout_ref, cout_ref = refs[-3], refs[-2], refs[-1]

    H = h_ref.shape[-1]
    out = x_ref[...]

    for i in range(n_layers):  # static unroll; state stays in vregs/VMEM
        w_ref, b_ref, lng_ref, lnb_ref = layer_refs[4 * i:4 * i + 4]
        h = h_ref[i]
        c = c_ref[i]
        has_proj = w_ref.shape[-1] > 4 * H  # layer 0 carries residual projection

        # Single MXU dot: [out, h] @ [[w_ih];[w_hh](|[w_res;0])]  -> (B, 4H[+H])
        xh = jnp.concatenate([out, h], axis=-1)
        z = (jnp.dot(xh, w_ref[...], preferred_element_type=jnp.float32)
             + b_ref[...])

        gates = z[:, :4 * H]
        # One full-width sigmoid pass over the whole gate block (EUP slot),
        # tanh only on the cell-candidate quarter.  PyTorch gate order i,f,g,o.
        sig = jax.nn.sigmoid(gates)
        i_g = sig[:, 0:H]
        f_g = sig[:, H:2 * H]
        o_g = sig[:, 3 * H:4 * H]
        g_g = jnp.tanh(gates[:, 2 * H:3 * H])

        c_new = f_g * c + i_g * g_g
        h_new = o_g * jnp.tanh(c_new)

        # LayerNorm over features (eps = 1e-5, PyTorch default)
        mu = jnp.mean(h_new, axis=-1, keepdims=True)
        var = jnp.mean((h_new - mu) ** 2, axis=-1, keepdims=True)
        y = (h_new - mu) * jax.lax.rsqrt(var + 1e-5) * lng_ref[...] + lnb_ref[...]

        # Residual: projected (already computed in the fused dot) on layer 0,
        # identity otherwise.
        res = z[:, 4 * H:5 * H] if has_proj else out
        out = y + res

        hout_ref[i] = h_new
        cout_ref[i] = c_new

    # Final FC into a lane-dense padded slab (unmasked store).
    pred_ref[...] = (jnp.dot(out, fc_w_ref[...], preferred_element_type=jnp.float32)
                     + fc_b_ref[...])


# ----------------------------------------------------------------------------
# Wrapper
# ----------------------------------------------------------------------------

def decoder_forward(fused, x, h_stack, c_stack):
    """One decoder timestep.

    x: (B, output_dim); h_stack/c_stack: (n_layers, B, H) stacked states.
    Returns (prediction (B, output_dim), next_h (L,B,H), next_c (L,B,H)).
    """
    n_layers = len(fused["layers"])
    B = x.shape[0]
    H = h_stack.shape[-1]
    P = fused["fc_w"].shape[-1]
    D = fused["output_dim"]

    inputs = [x, h_stack, c_stack]
    for lp in fused["layers"]:
        inputs += [lp["W"], lp["b"], lp["ln_g"], lp["ln_b"]]
    inputs += [fused["fc_w"], fused["fc_b"]]

    out_shape = (
        jax.ShapeDtypeStruct((B, P), jnp.float32),            # padded prediction
        jax.ShapeDtypeStruct((n_layers, B, H), jnp.float32),  # next hidden (stacked)
        jax.ShapeDtypeStruct((n_layers, B, H), jnp.float32),  # next cell (stacked)
    )
    kernel = functools.partial(_decoder_step_kernel, n_layers)
    pred_pad, h_out, c_out = pl.pallas_call(
        kernel,
        out_shape=out_shape,
        in_specs=[_VMEM] * len(inputs),
        out_specs=(_VMEM, _VMEM, _VMEM),
    )(*inputs)
    return pred_pad[:, :D], h_out, c_out


# ----------------------------------------------------------------------------
# Parameter init (PyTorch-style U(-1/sqrt(H), 1/sqrt(H))) and fusion
# ----------------------------------------------------------------------------

def init_decoder_params(key, output_dim, hidden_dim, n_layers):
    """Raw (unfused) params, matching the PyTorch module layout (pre-transposed)."""
    H = hidden_dim * 2
    layers = []

    def uni(k, shape, bound):
        return jax.random.uniform(k, shape, jnp.float32, -bound, bound)

    for i in range(n_layers):
        in_dim = output_dim if i == 0 else H
        bound = 1.0 / math.sqrt(H)
        key, k1, k2, k3, k4, k5, k6 = jax.random.split(key, 7)
        lp = {
            "w_ih": uni(k1, (in_dim, 4 * H), bound),   # (in, 4H)
            "w_hh": uni(k2, (H, 4 * H), bound),        # (H, 4H)
            "b": uni(k3, (1, 4 * H), bound) + uni(k4, (1, 4 * H), bound),
            "ln_g": jnp.ones((1, H), jnp.float32),
            "ln_b": jnp.zeros((1, H), jnp.float32),
            "w_res": None,
            "b_res": None,
        }
        if i == 0:
            lin_bound = 1.0 / math.sqrt(output_dim)
            lp["w_res"] = uni(k5, (output_dim, H), lin_bound)
            lp["b_res"] = uni(k6, (1, H), lin_bound)
        layers.append(lp)

    key, k1, k2 = jax.random.split(key, 3)
    fc_bound = 1.0 / math.sqrt(H)
    return {
        "layers": layers,
        "fc_w": uni(k1, (H, output_dim), fc_bound),
        "fc_b": uni(k2, (1, output_dim), fc_bound),
    }


def fuse_decoder_params(raw, output_dim):
    """Build the fused kernel weight layout from raw params (done once)."""
    layers = []
    for lp in raw["layers"]:
        w_ih, w_hh = lp["w_ih"], lp["w_hh"]
        H = w_hh.shape[0]
        if lp["w_res"] is not None:
            # [[w_ih | w_res], [w_hh | 0]]  -> (in + H, 5H);  bias -> (1, 5H)
            W = jnp.concatenate(
                [jnp.concatenate([w_ih, lp["w_res"]], axis=1),
                 jnp.concatenate([w_hh, jnp.zeros((H, H), jnp.float32)], axis=1)],
                axis=0)
            b = jnp.concatenate([lp["b"], lp["b_res"]], axis=1)
        else:
            W = jnp.concatenate([w_ih, w_hh], axis=0)   # (2H, 4H)
            b = lp["b"]
        layers.append({"W": W, "b": b, "ln_g": lp["ln_g"], "ln_b": lp["ln_b"]})

    H = raw["fc_w"].shape[0]
    P = _round_up(max(output_dim, 1), _LANE)
    fc_w = jnp.zeros((H, P), jnp.float32).at[:, :output_dim].set(raw["fc_w"])
    fc_b = jnp.zeros((1, P), jnp.float32).at[:, :output_dim].set(raw["fc_b"])
    return {"layers": layers, "fc_w": fc_w, "fc_b": fc_b, "output_dim": output_dim}


# ----------------------------------------------------------------------------
# Pure-JAX reference (unfused math, for a correctness sanity check)
# ----------------------------------------------------------------------------

def decoder_reference(raw, x, h_stack, c_stack):
    output = x
    nh, nc = [], []
    for i, lp in enumerate(raw["layers"]):
        h, c = h_stack[i], c_stack[i]
        H = h.shape[-1]
        gates = output @ lp["w_ih"] + h @ lp["w_hh"] + lp["b"]
        i_g = jax.nn.sigmoid(gates[:, 0:H])
        f_g = jax.nn.sigmoid(gates[:, H:2 * H])
        g_g = jnp.tanh(gates[:, 2 * H:3 * H])
        o_g = jax.nn.sigmoid(gates[:, 3 * H:4 * H])
        c_new = f_g * c + i_g * g_g
        h_new = o_g * jnp.tanh(c_new)
        mu = jnp.mean(h_new, -1, keepdims=True)
        var = jnp.mean((h_new - mu) ** 2, -1, keepdims=True)
        y = (h_new - mu) * jax.lax.rsqrt(var + 1e-5) * lp["ln_g"] + lp["ln_b"]
        res = output @ lp["w_res"] + lp["b_res"] if lp["w_res"] is not None else output
        output = y + res
        nh.append(h_new)
        nc.append(c_new)
    return output @ raw["fc_w"] + raw["fc_b"], jnp.stack(nh), jnp.stack(nc)


# ----------------------------------------------------------------------------
# Main
# ----------------------------------------------------------------------------

if __name__ == "__main__":
    output_dim, hidden_dim, n_layers, dropout = 8, 16, 2, 0.1
    batch = 8                      # multiple of 8 (f32 sublane count)
    H = hidden_dim * 2

    key = jax.random.PRNGKey(0)
    pkey, xkey, hkey, ckey = jax.random.split(key, 4)
    raw = init_decoder_params(pkey, output_dim, hidden_dim, n_layers)
    fused = fuse_decoder_params(raw, output_dim)

    x = jax.random.normal(xkey, (batch, output_dim), jnp.float32)
    h_stack = jax.random.normal(hkey, (n_layers, batch, H), jnp.float32)
    c_stack = jax.random.normal(ckey, (n_layers, batch, H), jnp.float32)

    step = jax.jit(lambda xx, hh, cc: decoder_forward(fused, xx, hh, cc))
    pred, next_h, next_c = step(x, h_stack, c_stack)
    jax.block_until_ready(pred)
    jax.block_until_ready(next_h)
    jax.block_until_ready(next_c)

    # Sanity check against the pure-JAX (unfused) reference
    pred_ref, nh_ref, nc_ref = decoder_reference(raw, x, h_stack, c_stack)
    assert jnp.allclose(pred, pred_ref, atol=1e-4, rtol=1e-4)
    assert jnp.allclose(next_h, nh_ref, atol=1e-4, rtol=1e-4)
    assert jnp.allclose(next_c, nc_ref, atol=1e-4, rtol=1e-4)

    print("KERNEL_OK")
</pallas_src>

<mosaic_0001>
module attributes {stable_mosaic.version = 11 : i64} {
  func.func @_decoder_step_kernel(%arg0: memref<8x8xf32, #tpu.memory_space<vmem>>, %arg1: memref<2x8x32xf32, #tpu.memory_space<vmem>>, %arg2: memref<2x8x32xf32, #tpu.memory_space<vmem>>, %arg3: memref<40x160xf32, #tpu.memory_space<vmem>>, %arg4: memref<1x160xf32, #tpu.memory_space<vmem>>, %arg5: memref<1x32xf32, #tpu.memory_space<vmem>>, %arg6: memref<1x32xf32, #tpu.memory_space<vmem>>, %arg7: memref<64x128xf32, #tpu.memory_space<vmem>>, %arg8: memref<1x128xf32, #tpu.memory_space<vmem>>, %arg9: memref<1x32xf32, #tpu.memory_space<vmem>>, %arg10: memref<1x32xf32, #tpu.memory_space<vmem>>, %arg11: memref<32x128xf32, #tpu.memory_space<vmem>>, %arg12: memref<1x128xf32, #tpu.memory_space<vmem>>, %arg13: memref<8x128xf32, #tpu.memory_space<vmem>>, %arg14: memref<2x8x32xf32, #tpu.memory_space<vmem>>, %arg15: memref<2x8x32xf32, #tpu.memory_space<vmem>>) attributes {dimension_semantics = [], scalar_prefetch = 0 : i64, scratch_operands = 0 : i64, tpu.core_type = #tpu.core_type<tc>} {
    %c0 = arith.constant 0 : index
    %c0_0 = arith.constant 0 : index
    %0 = vector.load %arg0[%c0, %c0_0] : memref<8x8xf32, #tpu.memory_space<vmem>>, vector<8x8xf32>
    %c0_1 = arith.constant 0 : index
    %c0_2 = arith.constant 0 : index
    %c0_3 = arith.constant 0 : index
    %1 = vector.load %arg1[%c0_1, %c0_2, %c0_3] : memref<2x8x32xf32, #tpu.memory_space<vmem>>, vector<1x8x32xf32>
    %2 = vector.shape_cast %1 : vector<1x8x32xf32> to vector<8x32xf32>
    %c0_4 = arith.constant 0 : index
    %c0_5 = arith.constant 0 : index
    %c0_6 = arith.constant 0 : index
    %3 = vector.load %arg2[%c0_4, %c0_5, %c0_6] : memref<2x8x32xf32, #tpu.memory_space<vmem>>, vector<1x8x32xf32>
    %4 = vector.shape_cast %3 : vector<1x8x32xf32> to vector<8x32xf32>
    %5 = tpu.concatenate %0, %2 in 1 : vector<8x8xf32>, vector<8x32xf32> -> vector<8x40xf32>
    %c0_7 = arith.constant 0 : index
    %c0_8 = arith.constant 0 : index
    %6 = vector.load %arg3[%c0_7, %c0_8] : memref<40x160xf32, #tpu.memory_space<vmem>>, vector<40x160xf32>
    %cst = arith.constant dense<0.000000e+00> : vector<8x160xf32>
    %7 = tpu.matmul %5, %6, %cst {dimension_numbers = #tpu.dot_dimension_numbers<[1], [0], [0], [1], [0, 0, 1, 1], [], []>} : vector<8x40xf32>, vector<40x160xf32>, vector<8x160xf32> -> vector<8x160xf32>
    %c0_9 = arith.constant 0 : index
    %c0_10 = arith.constant 0 : index
    %8 = vector.load %arg4[%c0_9, %c0_10] : memref<1x160xf32, #tpu.memory_space<vmem>>, vector<1x160xf32>
    %9 = vector.broadcast %8 : vector<1x160xf32> to vector<8x160xf32>
    %10 = arith.addf %7, %9 : vector<8x160xf32>
    %11 = vector.extract_strided_slice %10 {offsets = [0, 0], sizes = [8, 128], strides = [1, 1]} : vector<8x160xf32> to vector<8x128xf32>
    %12 = arith.negf %11 : vector<8x128xf32>
    %13 = math.exp %12 : vector<8x128xf32>
    %cst_11 = arith.constant 1.000000e+00 : f32
    %14 = vector.broadcast %cst_11 : f32 to vector<8x128xf32>
    %15 = arith.addf %14, %13 : vector<8x128xf32>
    %16 = arith.divf %14, %15 : vector<8x128xf32>
    %17 = vector.extract_strided_slice %16 {offsets = [0, 0], sizes = [8, 32], strides = [1, 1]} : vector<8x128xf32> to vector<8x32xf32>
    %18 = vector.extract_strided_slice %16 {offsets = [0, 32], sizes = [8, 32], strides = [1, 1]} : vector<8x128xf32> to vector<8x32xf32>
    %19 = vector.extract_strided_slice %16 {offsets = [0, 96], sizes = [8, 32], strides = [1, 1]} : vector<8x128xf32> to vector<8x32xf32>
    %20 = vector.extract_strided_slice %11 {offsets = [0, 64], sizes = [8, 32], strides = [1, 1]} : vector<8x128xf32> to vector<8x32xf32>
    %21 = math.tanh %20 : vector<8x32xf32>
    %22 = arith.mulf %18, %4 : vector<8x32xf32>
    %23 = arith.mulf %17, %21 : vector<8x32xf32>
    %24 = arith.addf %22, %23 : vector<8x32xf32>
    %25 = math.tanh %24 : vector<8x32xf32>
    %26 = arith.mulf %19, %25 : vector<8x32xf32>
    %cst_12 = arith.constant dense<0.000000e+00> : vector<8xf32>
    %27 = vector.multi_reduction <add>, %26, %cst_12 [1] : vector<8x32xf32> to vector<8xf32>
    %28 = vector.shape_cast %27 : vector<8xf32> to vector<8x1xf32>
    %cst_13 = arith.constant 3.200000e+01 : f32
    %29 = vector.broadcast %cst_13 : f32 to vector<8x1xf32>
    %30 = arith.divf %28, %29 : vector<8x1xf32>
    %31 = vector.broadcast %30 : vector<8x1xf32> to vector<8x32xf32>
    %32 = arith.subf %26, %31 : vector<8x32xf32>
    %33 = arith.mulf %32, %32 : vector<8x32xf32>
    %cst_14 = arith.constant dense<0.000000e+00> : vector<8xf32>
    %34 = vector.multi_reduction <add>, %33, %cst_14 [1] : vector<8x32xf32> to vector<8xf32>
    %35 = vector.shape_cast %34 : vector<8xf32> to vector<8x1xf32>
    %cst_15 = arith.constant 3.200000e+01 : f32
    %36 = vector.broadcast %cst_15 : f32 to vector<8x1xf32>
    %37 = arith.divf %35, %36 : vector<8x1xf32>
    %38 = vector.broadcast %30 : vector<8x1xf32> to vector<8x32xf32>
    %39 = arith.subf %26, %38 : vector<8x32xf32>
    %cst_16 = arith.constant 9.99999974E-6 : f32
    %40 = vector.broadcast %cst_16 : f32 to vector<8x1xf32>
    %41 = arith.addf %37, %40 : vector<8x1xf32>
    %42 = math.rsqrt %41 : vector<8x1xf32>
    %43 = vector.broadcast %42 : vector<8x1xf32> to vector<8x32xf32>
    %44 = arith.mulf %39, %43 : vector<8x32xf32>
    %c0_17 = arith.constant 0 : index
    %c0_18 = arith.constant 0 : index
    %45 = vector.load %arg5[%c0_17, %c0_18] : memref<1x32xf32, #tpu.memory_space<vmem>>, vector<1x32xf32>
    %46 = vector.broadcast %45 : vector<1x32xf32> to vector<8x32xf32>
    %47 = arith.mulf %44, %46 : vector<8x32xf32>
    %c0_19 = arith.constant 0 : index
    %c0_20 = arith.constant 0 : index
    %48 = vector.load %arg6[%c0_19, %c0_20] : memref<1x32xf32, #tpu.memory_space<vmem>>, vector<1x32xf32>
    %49 = vector.broadcast %48 : vector<1x32xf32> to vector<8x32xf32>
    %50 = arith.addf %47, %49 : vector<8x32xf32>
    %51 = vector.extract_strided_slice %10 {offsets = [0, 128], sizes = [8, 32], strides = [1, 1]} : vector<8x160xf32> to vector<8x32xf32>
    %52 = arith.addf %50, %51 : vector<8x32xf32>
    %c0_21 = arith.constant 0 : index
    %c0_22 = arith.constant 0 : index
    %c0_23 = arith.constant 0 : index
    %53 = vector.load %arg14[%c0_21, %c0_22, %c0_23] : memref<2x8x32xf32, #tpu.memory_space<vmem>>, vector<1x8x32xf32>
    %54 = vector.shape_cast %53 : vector<1x8x32xf32> to vector<8x32xf32>
    %55 = vector.shape_cast %26 : vector<8x32xf32> to vector<1x8x32xf32>
    tpu.vector_store %arg14[%c0_21, %c0_22, %c0_23], %55 {strides = array<i32>} : memref<2x8x32xf32, #tpu.memory_space<vmem>>, vector<1x8x32xf32>,
    %c0_24 = arith.constant 0 : index
    %c0_25 = arith.constant 0 : index
    %c0_26 = arith.constant 0 : index
    %56 = vector.load %arg15[%c0_24, %c0_25, %c0_26] : memref<2x8x32xf32, #tpu.memory_space<vmem>>, vector<1x8x32xf32>
    %57 = vector.shape_cast %56 : vector<1x8x32xf32> to vector<8x32xf32>
    %58 = vector.shape_cast %24 : vector<8x32xf32> to vector<1x8x32xf32>
    tpu.vector_store %arg15[%c0_24, %c0_25, %c0_26], %58 {strides = array<i32>} : memref<2x8x32xf32, #tpu.memory_space<vmem>>, vector<1x8x32xf32>,
    %c1 = arith.constant 1 : index
    %c0_27 = arith.constant 0 : index
    %c0_28 = arith.constant 0 : index
    %59 = vector.load %arg1[%c1, %c0_27, %c0_28] : memref<2x8x32xf32, #tpu.memory_space<vmem>>, vector<1x8x32xf32>
    %60 = vector.shape_cast %59 : vector<1x8x32xf32> to vector<8x32xf32>
    %c1_29 = arith.constant 1 : index
    %c0_30 = arith.constant 0 : index
    %c0_31 = arith.constant 0 : index
    %61 = vector.load %arg2[%c1_29, %c0_30, %c0_31] : memref<2x8x32xf32, #tpu.memory_space<vmem>>, vector<1x8x32xf32>
    %62 = vector.shape_cast %61 : vector<1x8x32xf32> to vector<8x32xf32>
    %63 = tpu.concatenate %52, %60 in 1 : vector<8x32xf32>, vector<8x32xf32> -> vector<8x64xf32>
    %c0_32 = arith.constant 0 : index
    %c0_33 = arith.constant 0 : index
    %64 = vector.load %arg7[%c0_32, %c0_33] : memref<64x128xf32, #tpu.memory_space<vmem>>, vector<64x128xf32>
    %cst_34 = arith.constant dense<0.000000e+00> : vector<8x128xf32>
    %65 = tpu.matmul %63, %64, %cst_34 {dimension_numbers = #tpu.dot_dimension_numbers<[1], [0], [0], [1], [0, 0, 1, 1], [], []>} : vector<8x64xf32>, vector<64x128xf32>, vector<8x128xf32> -> vector<8x128xf32>
    %c0_35 = arith.constant 0 : index
    %c0_36 = arith.constant 0 : index
    %66 = vector.load %arg8[%c0_35, %c0_36] : memref<1x128xf32, #tpu.memory_space<vmem>>, vector<1x128xf32>
    %67 = vector.broadcast %66 : vector<1x128xf32> to vector<8x128xf32>
    %68 = arith.addf %65, %67 : vector<8x128xf32>
    %69 = arith.negf %68 : vector<8x128xf32>
    %70 = math.exp %69 : vector<8x128xf32>
    %cst_37 = arith.constant 1.000000e+00 : f32
    %71 = vector.broadcast %cst_37 : f32 to vector<8x128xf32>
    %72 = arith.addf %71, %70 : vector<8x128xf32>
    %73 = arith.divf %71, %72 : vector<8x128xf32>
    %74 = vector.extract_strided_slice %73 {offsets = [0, 0], sizes = [8, 32], strides = [1, 1]} : vector<8x128xf32> to vector<8x32xf32>
    %75 = vector.extract_strided_slice %73 {offsets = [0, 32], sizes = [8, 32], strides = [1, 1]} : vector<8x128xf32> to vector<8x32xf32>
    %76 = vector.extract_strided_slice %73 {offsets = [0, 96], sizes = [8, 32], strides = [1, 1]} : vector<8x128xf32> to vector<8x32xf32>
    %77 = vector.extract_strided_slice %68 {offsets = [0, 64], sizes = [8, 32], strides = [1, 1]} : vector<8x128xf32> to vector<8x32xf32>
    %78 = math.tanh %77 : vector<8x32xf32>
    %79 = arith.mulf %75, %62 : vector<8x32xf32>
    %80 = arith.mulf %74, %78 : vector<8x32xf32>
    %81 = arith.addf %79, %80 : vector<8x32xf32>
    %82 = math.tanh %81 : vector<8x32xf32>
    %83 = arith.mulf %76, %82 : vector<8x32xf32>
    %cst_38 = arith.constant dense<0.000000e+00> : vector<8xf32>
    %84 = vector.multi_reduction <add>, %83, %cst_38 [1] : vector<8x32xf32> to vector<8xf32>
    %85 = vector.shape_cast %84 : vector<8xf32> to vector<8x1xf32>
    %cst_39 = arith.constant 3.200000e+01 : f32
    %86 = vector.broadcast %cst_39 : f32 to vector<8x1xf32>
    %87 = arith.divf %85, %86 : vector<8x1xf32>
    %88 = vector.broadcast %87 : vector<8x1xf32> to vector<8x32xf32>
    %89 = arith.subf %83, %88 : vector<8x32xf32>
    %90 = arith.mulf %89, %89 : vector<8x32xf32>
    %cst_40 = arith.constant dense<0.000000e+00> : vector<8xf32>
    %91 = vector.multi_reduction <add>, %90, %cst_40 [1] : vector<8x32xf32> to vector<8xf32>
    %92 = vector.shape_cast %91 : vector<8xf32> to vector<8x1xf32>
    %cst_41 = arith.constant 3.200000e+01 : f32
    %93 = vector.broadcast %cst_41 : f32 to vector<8x1xf32>
    %94 = arith.divf %92, %93 : vector<8x1xf32>
    %95 = vector.broadcast %87 : vector<8x1xf32> to vector<8x32xf32>
    %96 = arith.subf %83, %95 : vector<8x32xf32>
    %cst_42 = arith.constant 9.99999974E-6 : f32
    %97 = vector.broadcast %cst_42 : f32 to vector<8x1xf32>
    %98 = arith.addf %94, %97 : vector<8x1xf32>
    %99 = math.rsqrt %98 : vector<8x1xf32>
    %100 = vector.broadcast %99 : vector<8x1xf32> to vector<8x32xf32>
    %101 = arith.mulf %96, %100 : vector<8x32xf32>
    %c0_43 = arith.constant 0 : index
    %c0_44 = arith.constant 0 : index
    %102 = vector.load %arg9[%c0_43, %c0_44] : memref<1x32xf32, #tpu.memory_space<vmem>>, vector<1x32xf32>
    %103 = vector.broadcast %102 : vector<1x32xf32> to vector<8x32xf32>
    %104 = arith.mulf %101, %103 : vector<8x32xf32>
    %c0_45 = arith.constant 0 : index
    %c0_46 = arith.constant 0 : index
    %105 = vector.load %arg10[%c0_45, %c0_46] : memref<1x32xf32, #tpu.memory_space<vmem>>, vector<1x32xf32>
    %106 = vector.broadcast %105 : vector<1x32xf32> to vector<8x32xf32>
    %107 = arith.addf %104, %106 : vector<8x32xf32>
    %108 = arith.addf %107, %52 : vector<8x32xf32>
    %c1_47 = arith.constant 1 : index
    %c0_48 = arith.constant 0 : index
    %c0_49 = arith.constant 0 : index
    %109 = vector.load %arg14[%c1_47, %c0_48, %c0_49] : memref<2x8x32xf32, #tpu.memory_space<vmem>>, vector<1x8x32xf32>
    %110 = vector.shape_cast %109 : vector<1x8x32xf32> to vector<8x32xf32>
    %111 = vector.shape_cast %83 : vector<8x32xf32> to vector<1x8x32xf32>
    tpu.vector_store %arg14[%c1_47, %c0_48, %c0_49], %111 {strides = array<i32>} : memref<2x8x32xf32, #tpu.memory_space<vmem>>, vector<1x8x32xf32>,
    %c1_50 = arith.constant 1 : index
    %c0_51 = arith.constant 0 : index
    %c0_52 = arith.constant 0 : index
    %112 = vector.load %arg15[%c1_50, %c0_51, %c0_52] : memref<2x8x32xf32, #tpu.memory_space<vmem>>, vector<1x8x32xf32>
    %113 = vector.shape_cast %112 : vector<1x8x32xf32> to vector<8x32xf32>
    %114 = vector.shape_cast %81 : vector<8x32xf32> to vector<1x8x32xf32>
    tpu.vector_store %arg15[%c1_50, %c0_51, %c0_52], %114 {strides = array<i32>} : memref<2x8x32xf32, #tpu.memory_space<vmem>>, vector<1x8x32xf32>,
    %c0_53 = arith.constant 0 : index
    %c0_54 = arith.constant 0 : index
    %115 = vector.load %arg11[%c0_53, %c0_54] : memref<32x128xf32, #tpu.memory_space<vmem>>, vector<32x128xf32>
    %cst_55 = arith.constant dense<0.000000e+00> : vector<8x128xf32>
    %116 = tpu.matmul %108, %115, %cst_55 {dimension_numbers = #tpu.dot_dimension_numbers<[1], [0], [0], [1], [0, 0, 1, 1], [], []>} : vector<8x32xf32>, vector<32x128xf32>, vector<8x128xf32> -> vector<8x128xf32>
    %c0_56 = arith.constant 0 : index
    %c0_57 = arith.constant 0 : index
    %117 = vector.load %arg12[%c0_56, %c0_57] : memref<1x128xf32, #tpu.memory_space<vmem>>, vector<1x128xf32>
    %118 = vector.broadcast %117 : vector<1x128xf32> to vector<8x128xf32>
    %119 = arith.addf %116, %118 : vector<8x128xf32>
    %c0_58 = arith.constant 0 : index
    %c0_59 = arith.constant 0 : index
    %120 = vector.load %arg13[%c0_58, %c0_59] : memref<8x128xf32, #tpu.memory_space<vmem>>, vector<8x128xf32>
    tpu.vector_store %arg13[%c0_58, %c0_59], %119 {strides = array<i32>} : memref<8x128xf32, #tpu.memory_space<vmem>>, vector<8x128xf32>,
    return
  }
}

</mosaic_0001>

<llo_original>
// kernel: _lambda_.1
$region0: #{_lambda_.1}
  #allocation0 [shape = 'u32[]', space=smem, size = 0x4, offset = 0x4, fixed_abs, tag = 'smem constant byte address 0x4 - core index']
  #allocation1 [shape = 'u32[144,128]{1,0:T(1,128)}', space=vmem, size = 0x12000, scoped, tag = 'internal scratch']
  %s0 = inlined_call_operand.hbm [shape: f32[8,8], index: 0, kind: input, shape index: {}]
  %s1 = inlined_call_operand.hbm [shape: f32[2,8,32], index: 1, kind: input, shape index: {}]
  %s2 = inlined_call_operand.hbm [shape: f32[2,8,32], index: 2, kind: input, shape index: {}]
  %s3 = inlined_call_operand.hbm [shape: f32[40,160], index: 3, kind: input, shape index: {}]
  %s4 = inlined_call_operand.vmem [shape: f32[1,160], index: 4, kind: input, shape index: {}]
  %s5 = inlined_call_operand.vmem [shape: f32[1,32], index: 5, kind: input, shape index: {}, may-alias: {5,9}]
  %s6 = inlined_call_operand.vmem [shape: f32[1,32], index: 6, kind: input, shape index: {}, may-alias: {6,10}]
  %s7 = inlined_call_operand.hbm [shape: f32[64,128], index: 7, kind: input, shape index: {}]
  %s8 = inlined_call_operand.vmem [shape: f32[1,128], index: 8, kind: input, shape index: {}]
  %s9 = inlined_call_operand.vmem [shape: f32[1,32], index: 9, kind: input, shape index: {}, may-alias: {5,9}]
  %s10 = inlined_call_operand.vmem [shape: f32[1,32], index: 10, kind: input, shape index: {}, may-alias: {6,10}]
  %s11 = inlined_call_operand.vmem [shape: f32[32,128], index: 11, kind: input, shape index: {}]
  %s12 = inlined_call_operand.vmem [shape: f32[1,128], index: 12, kind: input, shape index: {}]
  %s13 = inlined_call_operand.hbm [shape: f32[8,128], index: 13, kind: output, shape index: {0}]
  %s14 = inlined_call_operand.hbm [shape: f32[2,8,32], index: 14, kind: output, shape index: {1}]
  %s15 = inlined_call_operand.hbm [shape: f32[2,8,32], index: 15, kind: output, shape index: {2}]
  %16 = xla_tuple %s13, %s14, %s15
  %s17 = sld [smem:[#allocation0]]
  $region98: #{_lambda_.1} parent=0
    _
  %s19 = ssub.s32 1, %s17
  %s20 = scalar_select 0, %s19, %s17
  $region1: #{_lambda_.1} parent=0
    #allocation2 [shape = 'u8[4096]{0}', space=vmem, size = 0x1000, scoped, tag = 'input window, operand 0, single buffered']
    #allocation3 [shape = 's32[1]{0}', space=sflag, size = 0x4, scoped, tag = 'scoped memory for _lambda_.1']
    #allocation4 [shape = 's32[1]{0}', space=sflag, size = 0x4, scoped, tag = 'scoped memory for _lambda_.1']
    #allocation5 [shape = 'u8[8192]{0}', space=vmem, size = 0x2000, scoped, tag = 'input window, operand 1, single buffered']
    #allocation6 [shape = 's32[1]{0}', space=sflag, size = 0x4, scoped, tag = 'scoped memory for _lambda_.1']
    #allocation7 [shape = 'u8[8192]{0}', space=vmem, size = 0x2000, scoped, tag = 'input window, operand 2, single buffered']
    #allocation8 [shape = 'u8[40960]{0}', space=vmem, size = 0xa000, scoped, tag = 'input window, operand 3, single buffered']
    #allocation9 [shape = 's32[1]{0}', space=sflag, size = 0x4, scoped, tag = 'scoped memory for _lambda_.1']
    #allocation10 [shape = 'u8[32768]{0}', space=vmem, size = 0x8000, scoped, tag = 'input window, operand 7, single buffered']
    #allocation11 [shape = 'u8[4096]{0}', space=vmem, size = 0x1000, scoped, tag = 'output window, operand 0, single buffered']
    #allocation12 [shape = 'u8[8192]{0}', space=vmem, size = 0x2000, scoped, tag = 'output window, operand 1, single buffered']
    #allocation13 [shape = 's32[1]{0}', space=sflag, size = 0x4, scoped, tag = 'scoped memory for _lambda_.1']
    #allocation14 [shape = 'u8[8192]{0}', space=vmem, size = 0x2000, scoped, tag = 'output window, operand 2, single buffered']
    %21 = vsyncpa [#allocation3], 0
    %22 = vsyncpa [#allocation6], 0
    %23 = vsyncpa [#allocation9], 0
    %24 = vsyncpa [#allocation4], 0
    %25 = vsyncpa [#allocation13], 0
    // Predicated region
    $region2: #{_lambda_.1} parent=1 // pred_check
      _
    $region3: #{_lambda_.1} parent=1 // pred_check_branch
      %27 = sbr.rel (0) target = $region5
    $region4: #{_lambda_.1} parent=1 // pred_region
      %s29 = ssub.s32 128, 128
      %30 = vsyncadd [#allocation3], %s29
      %s32 = sshll.u32 [#allocation2], 4
      %s33 = int_to_ptr.vmem [resolvable:$true] %s32
      %35 = dma.hbm_to_vmem [thread:$0]  %s0, 128, %s33, [#allocation3]
    $region5: #{_lambda_.1} parent=1 // pred_fallthru
      _
    // Predicated region
    $region6: #{_lambda_.1} parent=1 // pred_check
      _
    $region7: #{_lambda_.1} parent=1 // pred_check_branch
      %37 = sbr.rel (0) target = $region9
    $region8: #{_lambda_.1} parent=1 // pred_region
      %s39 = ssub.s32 256, 256
      %40 = vsyncadd [#allocation6], %s39
      %s41 = sshll.u32 [#allocation5], 4
      %s42 = int_to_ptr.vmem [resolvable:$true] %s41
      %47 = dma.hbm_to_vmem [thread:$0]  %s1, 256, %s42, [#allocation6], 128, 128, 8
    $region9: #{_lambda_.1} parent=1 // pred_fallthru
      _
    // Predicated region
    $region10: #{_lambda_.1} parent=1 // pred_check
      _
    $region11: #{_lambda_.1} parent=1 // pred_check_branch
      %49 = sbr.rel (0) target = $region13
    $region12: #{_lambda_.1} parent=1 // pred_region
      %s51 = ssub.s32 256, 256
      %52 = vsyncadd [#allocation6], %s51
      %s53 = sshll.u32 [#allocation7], 4
      %s54 = int_to_ptr.vmem [resolvable:$true] %s53
      %59 = dma.hbm_to_vmem [thread:$0]  %s2, 256, %s54, [#allocation6], 128, 128, 8
    $region13: #{_lambda_.1} parent=1 // pred_fallthru
      _
    // Predicated region
    $region14: #{_lambda_.1} parent=1 // pred_check
      _
    $region15: #{_lambda_.1} parent=1 // pred_check_branch
      %61 = sbr.rel (0) target = $region17
    $region16: #{_lambda_.1} parent=1 // pred_region
      %s63 = ssub.s32 1280, 1280
      %64 = vsyncadd [#allocation9], %s63
      %s65 = sshll.u32 [#allocation8], 4
      %s66 = int_to_ptr.vmem [resolvable:$true] %s65
      %71 = dma.hbm_to_vmem [thread:$0]  %s3, 1280, %s66, [#allocation9], 256, 256, 16
    $region17: #{_lambda_.1} parent=1 // pred_fallthru
      _
    // Predicated region
    $region18: #{_lambda_.1} parent=1 // pred_check
      _
    $region19: #{_lambda_.1} parent=1 // pred_check_branch
      %73 = sbr.rel (0) target = $region21
    $region20: #{_lambda_.1} parent=1 // pred_region
      _
    $region21: #{_lambda_.1} parent=1 // pred_fallthru
      _
    // Predicated region
    $region22: #{_lambda_.1} parent=1 // pred_check
      _
    $region23: #{_lambda_.1} parent=1 // pred_check_branch
      %75 = sbr.rel (0) target = $region25
    $region24: #{_lambda_.1} parent=1 // pred_region
      _
    $region25: #{_lambda_.1} parent=1 // pred_fallthru
      _
    // Predicated region
    $region26: #{_lambda_.1} parent=1 // pred_check
      _
    $region27: #{_lambda_.1} parent=1 // pred_check_branch
      %77 = sbr.rel (0) target = $region29
    $region28: #{_lambda_.1} parent=1 // pred_region
      _
    $region29: #{_lambda_.1} parent=1 // pred_fallthru
      _
    // Predicated region
    $region30: #{_lambda_.1} parent=1 // pred_check
      _
    $region31: #{_lambda_.1} parent=1 // pred_check_branch
      %79 = sbr.rel (0) target = $region33
    $region32: #{_lambda_.1} parent=1 // pred_region
      %s81 = ssub.s32 1024, 1024
      %82 = vsyncadd [#allocation9], %s81
      %s83 = sshll.u32 [#allocation10], 4
      %s84 = int_to_ptr.vmem [resolvable:$true] %s83
      %89 = dma.hbm_to_vmem [thread:$0]  %s7, 1024, %s84, [#allocation9], 128, 128, 8
    $region33: #{_lambda_.1} parent=1 // pred_fallthru
      _
    // Predicated region
    $region34: #{_lambda_.1} parent=1 // pred_check
      _
    $region35: #{_lambda_.1} parent=1 // pred_check_branch
      %91 = sbr.rel (0) target = $region37
    $region36: #{_lambda_.1} parent=1 // pred_region
      _
    $region37: #{_lambda_.1} parent=1 // pred_fallthru
      _
    // Predicated region
    $region38: #{_lambda_.1} parent=1 // pred_check
      _
    $region39: #{_lambda_.1} parent=1 // pred_check_branch
      %93 = sbr.rel (0) target = $region41
    $region40: #{_lambda_.1} parent=1 // pred_region
      _
    $region41: #{_lambda_.1} parent=1 // pred_fallthru
      _
    // Predicated region
    $region42: #{_lambda_.1} parent=1 // pred_check
      _
    $region43: #{_lambda_.1} parent=1 // pred_check_branch
      %95 = sbr.rel (0) target = $region45
    $region44: #{_lambda_.1} parent=1 // pred_region
      _
    $region45: #{_lambda_.1} parent=1 // pred_fallthru
      _
    // Predicated region
    $region46: #{_lambda_.1} parent=1 // pred_check
      _
    $region47: #{_lambda_.1} parent=1 // pred_check_branch
      %97 = sbr.rel (0) target = $region49
    $region48: #{_lambda_.1} parent=1 // pred_region
      _
    $region49: #{_lambda_.1} parent=1 // pred_fallthru
      _
    // Predicated region
    $region50: #{_lambda_.1} parent=1 // pred_check
      _
    $region51: #{_lambda_.1} parent=1 // pred_check_branch
      %99 = sbr.rel (0) target = $region53
    $region52: #{_lambda_.1} parent=1 // pred_region
      _
    $region53: #{_lambda_.1} parent=1 // pred_fallthru
      _
    // Predicated region
    $region54: #{_lambda_.1} parent=1 // pred_check
      _
    $region55: #{_lambda_.1} parent=1 // pred_check_branch
      %101 = sbr.rel (0) target = $region57
    $region56: #{_lambda_.1} parent=1 // pred_region
      %102 = dma.done [#allocation3], 128
    $region57: #{_lambda_.1} parent=1 // pred_fallthru
      _
    // Predicated region
    $region58: #{_lambda_.1} parent=1 // pred_check
      _
    $region59: #{_lambda_.1} parent=1 // pred_check_branch
      %104 = sbr.rel (0) target = $region61
    $region60: #{_lambda_.1} parent=1 // pred_region
      %105 = dma.done [#allocation6], 256
    $region61: #{_lambda_.1} parent=1 // pred_fallthru
      _
    // Predicated region
    $region62: #{_lambda_.1} parent=1 // pred_check
      _
    $region63: #{_lambda_.1} parent=1 // pred_check_branch
      %107 = sbr.rel (0) target = $region65
    $region64: #{_lambda_.1} parent=1 // pred_region
      %108 = dma.done [#allocation6], 256
    $region65: #{_lambda_.1} parent=1 // pred_fallthru
      _
    // Predicated region
    $region66: #{_lambda_.1} parent=1 // pred_check
      _
    $region67: #{_lambda_.1} parent=1 // pred_check_branch
      %110 = sbr.rel (0) target = $region69
    $region68: #{_lambda_.1} parent=1 // pred_region
      %111 = dma.done [#allocation9], 1280
    $region69: #{_lambda_.1} parent=1 // pred_fallthru
      _
    // Predicated region
    $region70: #{_lambda_.1} parent=1 // pred_check
      _
    $region71: #{_lambda_.1} parent=1 // pred_check_branch
      %113 = sbr.rel (0) target = $region73
    $region72: #{_lambda_.1} parent=1 // pred_region
      %114 = dma.done [#allocation9], 1024
    $region73: #{_lambda_.1} parent=1 // pred_fallthru
      _
    %v115 = vld [vmem:[#allocation2] sm:$0xff]
    %v116 = vld [vmem:[#allocation5] sm:$0xff]
    %v117 = vld [vmem:[#allocation7] sm:$0xff]
    %119 = vrot.lane.b32.xlu0 %v116, 8
    %v120 = vpop.permute.xlu0 %119
    %vm122 = vcmask 64512
    %v123 = vsel %vm122, %v115, %v120
    %v124 = vld [vmem:[#allocation8] sm:$0xff]
    %v125 = vld [vmem:[#allocation8 + $0x8] sm:$0xff]
    %v126 = vld [vmem:[#allocation8 + $0x10] sm:$0xff]
    %v127 = vld [vmem:[#allocation8 + $0x18] sm:$0xff]
    %v128 = vld [vmem:[#allocation8 + $0x20] sm:$0xff]
    %v129 = vld [vmem:[#allocation8 + $0x28] sm:$0xff]
    %v130 = vld [vmem:[#allocation8 + $0x30] sm:$0xff]
    %v131 = vld [vmem:[#allocation8 + $0x38] sm:$0xff]
    %v132 = vld [vmem:[#allocation8 + $0x40] sm:$0xff]
    %v133 = vld [vmem:[#allocation8 + $0x48] sm:$0xff]
    %v134 = vld [vmem:[%s4] sm:$0x3]
    %v136 = vlaneseq
    %v137 = vshrl.u32 %v136, 7
    %v138 = vsub.s32 0, %v137
    %v139 = vrot.slane %v134, %v138
    %v140 = vlaneseq
    %v141 = vshrl.u32 %v140, 7
    %v142 = vsub.s32 1, %v141
    %v143 = vrot.slane %v134, %v142
    %vm146 = vcmask 326656
    %v148 = vsel %vm146, %v123, 0
    %150 = vmatprep.subr.mxu0 %v125
    %151 = vmatpush1.msra.mxu0 %v124
    %152 = vmatprep.subr.mxu0 %v127
    %153 = vmatpush1.msra.mxu0 %v126
    %154 = vmatprep.subr.mxu0 %v129
    %155 = vmatpush1.msra.mxu0 %v128
    %156 = vmatprep.subr.mxu0 %v131
    %157 = vmatpush1.msra.mxu0 %v130
    %158 = vmatprep.subr.mxu0 %v133
    %159 = vmatpush1.msra.mxu0 %v132
    %160 = vmatprep.subr.mxu0 0.0
    %161 = vmatpush1.msra.mxu0 0.0
    %162 = vmatprep.subr.mxu0 0.0
    %163 = vmatpush1.msra.mxu0 0.0
    %164 = vmatprep.subr.mxu0 0.0
    %165 = vmatpush1.msra.mxu0 0.0
    %166 = vmatprep.subr.mxu0 0.0
    %167 = vmatpush1.msra.mxu0 0.0
    %168 = vmatprep.subr.mxu0 0.0
    %169 = vmatpush1.msra.mxu0 0.0
    %170 = vmatprep.subr.mxu0 0.0
    %171 = vmatpush1.msra.mxu0 0.0
    %172 = vmatprep.subr.mxu0 0.0
    %173 = vmatpush1.msra.mxu0 0.0
    %174 = vmatprep.subr.mxu0 0.0
    %175 = vmatpush1.msra.mxu0 0.0
    %176 = vmatprep.subr.mxu0 0.0
    %177 = vmatpush1.msra.mxu0 0.0
    %178 = vmatprep.subr.mxu0 0.0
    %179 = vmatpush1.msra.mxu0 0.0
    %180 = vmatprep.subr.mxu0 0.0
    %181 = vmatpush1.msra.mxu0 0.0
    %182 = vmatprep.subr.mxu0 0.0
    %183 = vmatpush1.msra.mxu0 0.0
    %184 = vmatprep.subr.mxu0 0.0
    %185 = vmatpush1.msra.mxu0 0.0
    %186 = vmatprep.subr.mxu0 0.0
    %187 = vmatpush1.msra.mxu0 0.0
    %188 = vmatprep.subr.mxu0 0.0
    %189 = vmatpush1.msra.mxu0 0.0
    %190 = vmatprep.subr.mxu0 0.0
    %191 = vmatpush1.msra.mxu0 0.0
    %192 = vmatprep.subr.mxu0 0.0
    %193 = vmatpush1.msra.mxu0 0.0
    %194 = vmatprep.subr.mxu0 0.0
    %195 = vmatpush1.msra.mxu0 0.0
    %196 = vmatprep.subr.mxu0 0.0
    %197 = vmatpush1.msra.mxu0 0.0
    %198 = vmatprep.subr.mxu0 0.0
    %199 = vmatpush1.msra.mxu0 0.0
    %200 = vmatprep.subr.mxu0 0.0
    %201 = vmatpush1.msra.mxu0 0.0
    %202 = vmatprep.subr.mxu0 0.0
    %203 = vmatpush1.msra.mxu0 0.0
    %204 = vmatprep.subr.mxu0 0.0
    %205 = vmatpush1.msra.mxu0 0.0
    %206 = vmatprep.subr.mxu0 0.0
    %207 = vmatpush1.msra.mxu0 0.0
    %208 = vmatprep.subr.mxu0 0.0
    %209 = vmatpush1.msra.mxu0 0.0
    %210 = vmatprep.subr.mxu0 0.0
    %211 = vmatpush1.msra.mxu0 0.0
    %212 = vmatprep.subr.mxu0 0.0
    %213 = vmatpush1.msra.mxu0 0.0
    %214 = vmatprep.mubr.f32.mxu0 0.0
    %215 = vmatmul.mubr.f32.gmra.mrb[0].mxu0 %v148
    %v216 = vpop.f32.mrb[0].mxu0
    %v217 = vadd.f32 %v139, %v216
    %v218 = vpop.f32.mrb[0].mxu0
    %v219 = vadd.f32 %v143, %v218
    %220 = vdwg.mxu0
    %v221 = vxor.u32 %v217, 2147483648
    %v222 = vmul.f32 %v221, 1.442695
    %v223 = vpow.pop %v222
    %v224 = vadd.f32 %v223, 1.0
    %v225 = vrcp.pop %v224
    %v226 = vmul.f32 1.0, %v225
    %v227 = vtanh.pop %v217
    %229 = vrot.lane.b32.xlu0 %v117, 32
    %v230 = vpop.permute.xlu0 %229
    %v232 = vmul.f32 %v226, %v230
    %234 = vrot.lane.b32.xlu0 %v227, 64
    %v235 = vpop.permute.xlu0 %234
    %v237 = vmul.f32 %v226, %v235
    %239 = vrot.lane.b32.xlu0 %v237, 32
    %v240 = vpop.permute.xlu0 %239
    %v242 = vadd.f32 %v232, %v240
    %v243 = vtanh.pop %v242
    %245 = vrot.lane.b32.xlu0 %v243, 64
    %v246 = vpop.permute.xlu0 %245
    %v248 = vmul.f32 %v226, %v246
    %250 = vrot.lane.b32.xlu0 %v248, 32
    %v251 = vpop.permute.xlu0 %250
    %vm253 = vcmask 261120
    %v254 = vsel %vm253, %v251, 0.0
    %255 = vadd.xlane.f32.xlu0 %v254
    %v256 = vpop.xlane.xlu0 %255
    %v257 = vrcp.pop 32.0
    %v258 = vmul.f32 %v256, %v257
    %v259 = vsub.f32 %v248, %v258
    %v260 = vmul.f32 %v259, %v259
    %262 = vrot.lane.b32.xlu0 %v260, 32
    %v263 = vpop.permute.xlu0 %262
    %v265 = vsel %vm253, %v263, 0.0
    %266 = vadd.xlane.f32.xlu0 %v265
    %v267 = vpop.xlane.xlu0 %266
    %v268 = vmul.f32 %v267, %v257
    %v269 = vadd.f32 %v268, 1e-05
    %v270 = vrsqrt.pop %v269
    %v271 = vmul.f32 %v259, %v270
    %v272 = vld [vmem:[%s5] sm:$0x1]
    %v274 = vlaneseq
    %v275 = vshrl.u32 %v274, 7
    %v276 = vsub.s32 0, %v275
    %v277 = vrot.slane %v272, %v276
    %278 = vrot.lane.b32.xlu0 %v277, 96
    %v279 = vpop.permute.xlu0 %278
    %v281 = vmul.f32 %v271, %v279
    %v282 = vld [vmem:[%s6] sm:$0x1]
    %v284 = vlaneseq
    %v285 = vshrl.u32 %v284, 7
    %v286 = vsub.s32 0, %v285
    %v287 = vrot.slane %v282, %v286
    %288 = vrot.lane.b32.xlu0 %v287, 96
    %v289 = vpop.permute.xlu0 %288
    %v291 = vadd.f32 %v281, %v289
    %293 = vrot.lane.b32.xlu0 %v219, 96
    %v294 = vpop.permute.xlu0 %293
    %v296 = vadd.f32 %v291, %v294
    %297 = vst.msk [vmem:[#allocation12] sm:$0xff] %vm253, %v251
    %299 = vrot.lane.b32.xlu0 %v242, 96
    %v300 = vpop.permute.xlu0 %299
    %302 = vst.msk [vmem:[#allocation14] sm:$0xff] %vm253, %v300
    %s303 = scalar_lea.vmem [#allocation5], 8
    %v304 = vld [vmem:[%s303] sm:$0xff]
    %s305 = scalar_lea.vmem [#allocation7], 8
    %v306 = vld [vmem:[%s305] sm:$0xff]
    %308 = vrot.lane.b32.xlu0 %v296, 32
    %v309 = vpop.permute.xlu0 %308
    %312 = vrot.lane.b32.xlu0 %v304, 32
    %v313 = vpop.permute.xlu0 %312
    %v315 = vsel %vm253, %v309, %v313
    %v316 = vld [vmem:[#allocation10] sm:$0xff]
    %v317 = vld [vmem:[#allocation10 + $0x8] sm:$0xff]
    %v318 = vld [vmem:[#allocation10 + $0x10] sm:$0xff]
    %v319 = vld [vmem:[#allocation10 + $0x18] sm:$0xff]
    %v320 = vld [vmem:[#allocation10 + $0x20] sm:$0xff]
    %v321 = vld [vmem:[#allocation10 + $0x28] sm:$0xff]
    %v322 = vld [vmem:[#allocation10 + $0x30] sm:$0xff]
    %v323 = vld [vmem:[#allocation10 + $0x38] sm:$0xff]
    %v324 = vld [vmem:[%s8] sm:$0x1]
    %v326 = vlaneseq
    %v327 = vshrl.u32 %v326, 7
    %v328 = vsub.s32 0, %v327
    %v329 = vrot.slane %v324, %v328
    %vm331 = vcmask 523264
    %v333 = vsel %vm331, %v315, 0
    %335 = vmatprep.subr.mxu0 0.0
    %336 = vmatpush1.msra.mxu0 %v316
    %337 = vmatprep.subr.mxu0 0.0
    %338 = vmatpush1.msra.mxu0 %v317
    %339 = vmatprep.subr.mxu0 0.0
    %340 = vmatpush1.msra.mxu0 %v318
    %341 = vmatprep.subr.mxu0 0.0
    %342 = vmatpush1.msra.mxu0 %v319
    %343 = vmatprep.subr.mxu0 0.0
    %344 = vmatpush1.msra.mxu0 %v320
    %345 = vmatprep.subr.mxu0 0.0
    %346 = vmatpush1.msra.mxu0 %v321
    %347 = vmatprep.subr.mxu0 0.0
    %348 = vmatpush1.msra.mxu0 %v322
    %349 = vmatprep.subr.mxu0 0.0
    %350 = vmatpush1.msra.mxu0 %v323
    %351 = vmatprep.subr.mxu0 0.0
    %352 = vmatpush1.msra.mxu0 0.0
    %353 = vmatprep.subr.mxu0 0.0
    %354 = vmatpush1.msra.mxu0 0.0
    %355 = vmatprep.subr.mxu0 0.0
    %356 = vmatpush1.msra.mxu0 0.0
    %357 = vmatprep.subr.mxu0 0.0
    %358 = vmatpush1.msra.mxu0 0.0
    %359 = vmatprep.subr.mxu0 0.0
    %360 = vmatpush1.msra.mxu0 0.0
    %361 = vmatprep.subr.mxu0 0.0
    %362 = vmatpush1.msra.mxu0 0.0
    %363 = vmatprep.subr.mxu0 0.0
    %364 = vmatpush1.msra.mxu0 0.0
    %365 = vmatprep.subr.mxu0 0.0
    %366 = vmatpush1.msra.mxu0 0.0
    %367 = vmatprep.subr.mxu0 0.0
    %368 = vmatpush1.msra.mxu0 0.0
    %369 = vmatprep.subr.mxu0 0.0
    %370 = vmatpush1.msra.mxu0 0.0
    %371 = vmatprep.subr.mxu0 0.0
    %372 = vmatpush1.msra.mxu0 0.0
    %373 = vmatprep.subr.mxu0 0.0
    %374 = vmatpush1.msra.mxu0 0.0
    %375 = vmatprep.subr.mxu0 0.0
    %376 = vmatpush1.msra.mxu0 0.0
    %377 = vmatprep.subr.mxu0 0.0
    %378 = vmatpush1.msra.mxu0 0.0
    %379 = vmatprep.subr.mxu0 0.0
    %380 = vmatpush1.msra.mxu0 0.0
    %381 = vmatprep.subr.mxu0 0.0
    %382 = vmatpush1.msra.mxu0 0.0
    %383 = vmatprep.subr.mxu0 0.0
    %384 = vmatpush1.msra.mxu0 0.0
    %385 = vmatprep.subr.mxu0 0.0
    %386 = vmatpush1.msra.mxu0 0.0
    %387 = vmatprep.subr.mxu0 0.0
    %388 = vmatpush1.msra.mxu0 0.0
    %389 = vmatprep.subr.mxu0 0.0
    %390 = vmatpush1.msra.mxu0 0.0
    %391 = vmatprep.subr.mxu0 0.0
    %392 = vmatpush1.msra.mxu0 0.0
    %393 = vmatprep.subr.mxu0 0.0
    %394 = vmatpush1.msra.mxu0 0.0
    %395 = vmatprep.subr.mxu0 0.0
    %396 = vmatpush1.msra.mxu0 0.0
    %397 = vmatprep.subr.mxu0 0.0
    %398 = vmatpush1.msra.mxu0 0.0
    %399 = vmatprep.mubr.f32.mxu0 0.0
    %400 = vmatmul.mubr.f32.gmra.mrb[0].mxu0 %v333
    %v401 = vpop.f32.mrb[0].mxu0
    %v402 = vadd.f32 %v329, %v401
    %v403 = vpop.f32.mrb[0].mxu0
    %404 = vdwg.mxu0
    %v405 = vxor.u32 %v402, 2147483648
    %v406 = vmul.f32 %v405, 1.442695
    %v407 = vpow.pop %v406
    %v408 = vadd.f32 %v407, 1.0
    %v409 = vrcp.pop %v408
    %v410 = vmul.f32 1.0, %v409
    %v411 = vtanh.pop %v402
    %413 = vrot.lane.b32.xlu0 %v306, 32
    %v414 = vpop.permute.xlu0 %413
    %v416 = vmul.f32 %v410, %v414
    %418 = vrot.lane.b32.xlu0 %v411, 64
    %v419 = vpop.permute.xlu0 %418
    %v421 = vmul.f32 %v410, %v419
    %423 = vrot.lane.b32.xlu0 %v421, 32
    %v424 = vpop.permute.xlu0 %423
    %v426 = vadd.f32 %v416, %v424
    %v427 = vtanh.pop %v426
    %429 = vrot.lane.b32.xlu0 %v427, 64
    %v430 = vpop.permute.xlu0 %429
    %v432 = vmul.f32 %v410, %v430
    %434 = vrot.lane.b32.xlu0 %v432, 32
    %v435 = vpop.permute.xlu0 %434
    %v437 = vsel %vm253, %v435, 0.0
    %438 = vadd.xlane.f32.xlu0 %v437
    %v439 = vpop.xlane.xlu0 %438
    %v440 = vmul.f32 %v439, %v257
    %v441 = vsub.f32 %v432, %v440
    %v442 = vmul.f32 %v441, %v441
    %444 = vrot.lane.b32.xlu0 %v442, 32
    %v445 = vpop.permute.xlu0 %444
    %v447 = vsel %vm253, %v445, 0.0
    %448 = vadd.xlane.f32.xlu0 %v447
    %v449 = vpop.xlane.xlu0 %448
    %v450 = vmul.f32 %v449, %v257
    %v451 = vadd.f32 %v450, 1e-05
    %v452 = vrsqrt.pop %v451
    %v453 = vmul.f32 %v441, %v452
    %v454 = vld [vmem:[%s9] sm:$0x1]
    %v456 = vlaneseq
    %v457 = vshrl.u32 %v456, 7
    %v458 = vsub.s32 0, %v457
    %v459 = vrot.slane %v454, %v458
    %460 = vrot.lane.b32.xlu0 %v459, 96
    %v461 = vpop.permute.xlu0 %460
    %v463 = vmul.f32 %v453, %v461
    %v464 = vld [vmem:[%s10] sm:$0x1]
    %v466 = vlaneseq
    %v467 = vshrl.u32 %v466, 7
    %v468 = vsub.s32 0, %v467
    %v469 = vrot.slane %v464, %v468
    %470 = vrot.lane.b32.xlu0 %v469, 96
    %v471 = vpop.permute.xlu0 %470
    %v473 = vadd.f32 %v463, %v471
    %v474 = vadd.f32 %v473, %v296
    %s475 = scalar_lea.vmem [#allocation12], 8
    %476 = vst.msk [vmem:[%s475] sm:$0xff] %vm253, %v435
    %478 = vrot.lane.b32.xlu0 %v426, 96
    %v479 = vpop.permute.xlu0 %478
    %s481 = scalar_lea.vmem [#allocation14], 8
    %482 = vst.msk [vmem:[%s481] sm:$0xff] %vm253, %v479
    %v483 = vld [vmem:[%s11] sm:$0xff]
    %v484 = vld [vmem:[%s11 + $0x8] sm:$0xff]
    %v485 = vld [vmem:[%s11 + $0x10] sm:$0xff]
    %v486 = vld [vmem:[%s11 + $0x18] sm:$0xff]
    %v487 = vld [vmem:[%s12] sm:$0x1]
    %v489 = vlaneseq
    %v490 = vshrl.u32 %v489, 7
    %v491 = vsub.s32 0, %v490
    %v492 = vrot.slane %v487, %v491
    %495 = vrot.lane.b32.xlu0 %v474, 32
    %v496 = vpop.permute.xlu0 %495
    %v497 = vsel %vm253, %v496, 0
    %499 = vmatprep.subr.mxu0 0.0
    %500 = vmatpush1.msra.mxu0 %v483
    %501 = vmatprep.subr.mxu0 0.0
    %502 = vmatpush1.msra.mxu0 %v484
    %503 = vmatprep.subr.mxu0 0.0
    %504 = vmatpush1.msra.mxu0 %v485
    %505 = vmatprep.subr.mxu0 0.0
    %506 = vmatpush1.msra.mxu0 %v486
    %507 = vmatprep.subr.mxu0 0.0
    %508 = vmatpush1.msra.mxu0 0.0
    %509 = vmatprep.subr.mxu0 0.0
    %510 = vmatpush1.msra.mxu0 0.0
    %511 = vmatprep.subr.mxu0 0.0
    %512 = vmatpush1.msra.mxu0 0.0
    %513 = vmatprep.subr.mxu0 0.0
    %514 = vmatpush1.msra.mxu0 0.0
    %515 = vmatprep.subr.mxu0 0.0
    %516 = vmatpush1.msra.mxu0 0.0
    %517 = vmatprep.subr.mxu0 0.0
    %518 = vmatpush1.msra.mxu0 0.0
    %519 = vmatprep.subr.mxu0 0.0
    %520 = vmatpush1.msra.mxu0 0.0
    %521 = vmatprep.subr.mxu0 0.0
    %522 = vmatpush1.msra.mxu0 0.0
    %523 = vmatprep.subr.mxu0 0.0
    %524 = vmatpush1.msra.mxu0 0.0
    %525 = vmatprep.subr.mxu0 0.0
    %526 = vmatpush1.msra.mxu0 0.0
    %527 = vmatprep.subr.mxu0 0.0
    %528 = vmatpush1.msra.mxu0 0.0
    %529 = vmatprep.subr.mxu0 0.0
    %530 = vmatpush1.msra.mxu0 0.0
    %531 = vmatprep.subr.mxu0 0.0
    %532 = vmatpush1.msra.mxu0 0.0
    %533 = vmatprep.subr.mxu0 0.0
    %534 = vmatpush1.msra.mxu0 0.0
    %535 = vmatprep.subr.mxu0 0.0
    %536 = vmatpush1.msra.mxu0 0.0
    %537 = vmatprep.subr.mxu0 0.0
    %538 = vmatpush1.msra.mxu0 0.0
    %539 = vmatprep.subr.mxu0 0.0
    %540 = vmatpush1.msra.mxu0 0.0
    %541 = vmatprep.subr.mxu0 0.0
    %542 = vmatpush1.msra.mxu0 0.0
    %543 = vmatprep.subr.mxu0 0.0
    %544 = vmatpush1.msra.mxu0 0.0
    %545 = vmatprep.subr.mxu0 0.0
    %546 = vmatpush1.msra.mxu0 0.0
    %547 = vmatprep.subr.mxu0 0.0
    %548 = vmatpush1.msra.mxu0 0.0
    %549 = vmatprep.subr.mxu0 0.0
    %550 = vmatpush1.msra.mxu0 0.0
    %551 = vmatprep.subr.mxu0 0.0
    %552 = vmatpush1.msra.mxu0 0.0
    %553 = vmatprep.subr.mxu0 0.0
    %554 = vmatpush1.msra.mxu0 0.0
    %555 = vmatprep.subr.mxu0 0.0
    %556 = vmatpush1.msra.mxu0 0.0
    %557 = vmatprep.subr.mxu0 0.0
    %558 = vmatpush1.msra.mxu0 0.0
    %559 = vmatprep.subr.mxu0 0.0
    %560 = vmatpush1.msra.mxu0 0.0
    %561 = vmatprep.subr.mxu0 0.0
    %562 = vmatpush1.msra.mxu0 0.0
    %563 = vmatprep.mubr.f32.mxu0 0.0
    %564 = vmatmul.mubr.f32.gmra.mrb[0].mxu0 %v497
    %v565 = vpop.f32.mrb[0].mxu0
    %v566 = vadd.f32 %v492, %v565
    %v567 = vpop.f32.mrb[0].mxu0
    %568 = vdwg.mxu0
    %569 = vst [vmem:[#allocation11] sm:$0xff] %v566
    // Predicated region
    $region74: #{_lambda_.1} parent=1 // pred_check
      _
    $region75: #{_lambda_.1} parent=1 // pred_check_branch
      %571 = sbr.rel (0) target = $region77
    $region76: #{_lambda_.1} parent=1 // pred_region
      %s573 = ssub.s32 128, 128
      %574 = vsyncadd [#allocation4], %s573
      %s576 = sshll.u32 [#allocation11], 4
      %s577 = int_to_ptr.vmem [resolvable:$true] %s576
      %579 = dma.vmem_to_hbm [thread:$0]  %s577, 128, %s13, [#allocation4]
    $region77: #{_lambda_.1} parent=1 // pred_fallthru
      _
    // Predicated region
    $region78: #{_lambda_.1} parent=1 // pred_check
      _
    $region79: #{_lambda_.1} parent=1 // pred_check_branch
      %581 = sbr.rel (0) target = $region81
    $region80: #{_lambda_.1} parent=1 // pred_region
      %s583 = ssub.s32 256, 256
      %584 = vsyncadd [#allocation13], %s583
      %s585 = sshll.u32 [#allocation12], 4
      %s586 = int_to_ptr.vmem [resolvable:$true] %s585
      %591 = dma.vmem_to_hbm [thread:$0]  %s586, 256, %s14, [#allocation13], 128, 128, 8
    $region81: #{_lambda_.1} parent=1 // pred_fallthru
      _
    // Predicated region
    $region82: #{_lambda_.1} parent=1 // pred_check
      _
    $region83: #{_lambda_.1} parent=1 // pred_check_branch
      %593 = sbr.rel (0) target = $region85
    $region84: #{_lambda_.1} parent=1 // pred_region
      %s595 = ssub.s32 256, 256
      %596 = vsyncadd [#allocation13], %s595
      %s597 = sshll.u32 [#allocation14], 4
      %s598 = int_to_ptr.vmem [resolvable:$true] %s597
      %603 = dma.vmem_to_hbm [thread:$0]  %s598, 256, %s15, [#allocation13], 128, 128, 8
    $region85: #{_lambda_.1} parent=1 // pred_fallthru
      _
    // Predicated region
    $region86: #{_lambda_.1} parent=1 // pred_check
      _
    $region87: #{_lambda_.1} parent=1 // pred_check_branch
      %605 = sbr.rel (0) target = $region89
    $region88: #{_lambda_.1} parent=1 // pred_region
      %606 = dma.done [#allocation4], 128
    $region89: #{_lambda_.1} parent=1 // pred_fallthru
      _
    // Predicated region
    $region90: #{_lambda_.1} parent=1 // pred_check
      _
    $region91: #{_lambda_.1} parent=1 // pred_check_branch
      %608 = sbr.rel (0) target = $region93
    $region92: #{_lambda_.1} parent=1 // pred_region
      %609 = dma.done [#allocation13], 256
    $region93: #{_lambda_.1} parent=1 // pred_fallthru
      _
    // Predicated region
    $region94: #{_lambda_.1} parent=1 // pred_check
      _
    $region95: #{_lambda_.1} parent=1 // pred_check_branch
      %611 = sbr.rel (0) target = $region97
    $region96: #{_lambda_.1} parent=1 // pred_region
      %612 = dma.done [#allocation13], 256
    $region97: #{_lambda_.1} parent=1 // pred_fallthru
      _
    %613 = vsyncpa [#allocation3], 1
    %614 = vsyncpa [#allocation6], 1
    %615 = vsyncpa [#allocation9], 1
    %616 = vsyncpa [#allocation4], 1
    %617 = vsyncpa [#allocation13], 1

</llo_original>
